<compile_context>
chip_gen: v7x
topology: tpu7x:2x2x1
jax: 0.10.0
libtpu: 0.0.40
codegen_flags: <defaults>
</compile_context>

<pallas_src>
import functools

import jax
import jax.numpy as jnp
from jax.experimental import pallas as pl
from jax.experimental.pallas import tpu as pltpu


# ------------------------------ helpers ------------------------------------ #

def _round_up(x: int, m: int) -> int:
    return ((x + m - 1) // m) * m


def _vmem_capacity_bytes() -> int:
    """Per-core VMEM capacity for this generation (conservative fallback)."""
    try:
        info = pltpu.get_tpu_info()
        for attr in ("vmem_capacity_bytes", "vmem_size_bytes", "vmem_bytes"):
            cap = getattr(info, attr, None)
            if cap:
                return int(cap)
    except Exception:
        pass
    return 64 * 1024 * 1024  # v7x per-TensorCore VMEM (smallest current gen)


def _vmem_limit_bytes(tile_b, in_dim, pad_dims, param_bytes, itemsize) -> int:
    """Tile budget: double-buffered x/out + resident params + live activations,
    clamped to ~80% of this generation's physical VMEM."""
    io_bytes = tile_b * (in_dim + 1) * itemsize          # x tile + (tile_b,1) out
    act_bytes = tile_b * max(pad_dims[1:]) * 4           # f32 live activations
    est = 2 * io_bytes + 2 * param_bytes + 4 * act_bytes + (4 << 20)  # headroom
    cap = _vmem_capacity_bytes()
    return int(min(max(est, 8 << 20), int(0.80 * cap)))  # ~51 MiB on v7x, ~102 MiB on v5e/v6e


def _choose_tile_b(B: int, max_tile_b: int) -> int:
    """>=2 tiles (keeps both v7x TCs busy on the 'parallel' axis) sized to
    divide B as evenly as possible (minimal last-tile padding)."""
    max_tile_b = max(8, (max_tile_b // 8) * 8)
    num_tiles = max(2, pl.cdiv(B, max_tile_b))
    tile_b = _round_up(pl.cdiv(B, num_tiles), 8)
    return max(8, min(tile_b, _round_up(B, 8), max_tile_b))


# ----------------------------- Pallas kernel ------------------------------- #

def _mlp_kernel(*refs, num_layers: int):
    """Fused MLP on one batch tile.

    refs = (x_ref, w0_ref, b0_ref, w1_ref, b1_ref, ..., o_ref).
    Hidden layers apply tanh; the head (last layer) is linear. Activations
    never leave VMEM/vregs; only the real value column is stored to HBM.
    """
    x_ref = refs[0]
    o_ref = refs[-1]
    h = x_ref[...]                                   # keep input dtype (f32/bf16) for the MXU
    for layer in range(num_layers):
        w = refs[1 + 2 * layer][...]
        b = refs[2 + 2 * layer][...]
        h = jnp.dot(h, w, preferred_element_type=jnp.float32)   # f32 accumulate
        h = h + b.astype(jnp.float32)                # (1, out_pad) broadcasts over the tile
        if layer != num_layers - 1:
            h = jnp.tanh(h).astype(w.dtype)          # EUP slot; next dot in param dtype
    o_ref[...] = h[:, :1].astype(o_ref.dtype)        # narrow 1-lane store: real value only


# ----------------------------- ValueNetwork -------------------------------- #

def init_value_network_params(key, input_dim, hidden_dims):
    """Deterministic init matching nn.Linear's U(-1/sqrt(in), 1/sqrt(in)).

    Weights are stored as (in, out) — transpose of PyTorch's (out, in).
    """
    params = []
    in_dim = input_dim
    dims = list(hidden_dims) + [1]
    for i, out_dim in enumerate(dims):
        kw, kb = jax.random.split(jax.random.fold_in(key, i))
        bound = 1.0 / jnp.sqrt(jnp.float32(in_dim))
        w = jax.random.uniform(kw, (in_dim, out_dim), jnp.float32, -bound, bound)
        b = jax.random.uniform(kb, (1, out_dim), jnp.float32, -bound, bound)
        params.append((w, b))
        in_dim = out_dim
    return params


def prepare_value_network_params(params, param_dtype=jnp.float32):
    """Pad parameters ONCE (hoisted out of the forward path).

    Only OUT dims are zero-padded to 128 lanes; the first layer's IN dim stays
    at the real input width. Set param_dtype=jnp.bfloat16 to halve param/x HBM
    bytes (accumulation stays f32) — numerics change, flag to the model owner.
    Returns (flat_padded_params, real_dims, pad_dims).
    """
    real_dims = [params[0][0].shape[0]] + [w.shape[1] for (w, _) in params]
    pad_dims = [real_dims[0]] + [_round_up(d, 128) for d in real_dims[1:]]
    flat = []
    for l, (w, b) in enumerate(params):
        wp = jnp.zeros((pad_dims[l], pad_dims[l + 1]), param_dtype)
        wp = wp.at[: w.shape[0], : w.shape[1]].set(w.astype(param_dtype))
        bp = jnp.zeros((1, pad_dims[l + 1]), param_dtype)
        bp = bp.at[:, : b.shape[-1]].set(b.reshape(1, -1).astype(param_dtype))
        flat += [wp, bp]
    return tuple(flat), tuple(real_dims), tuple(pad_dims)


def value_network_forward(prepared, x, *, max_tile_b: int = 1024):
    """Reproduces ValueNetwork.forward: tanh MLP trunk + linear head -> (B, 1).

    Single fused pallas_call, tiled over batch ("parallel" axis), weights
    VMEM-resident, x read at real width, narrow (B, 1) output.
    """
    flat_params, real_dims, pad_dims = prepared
    B, in_dim = x.shape
    assert in_dim == real_dims[0], "x feature dim does not match prepared params"
    num_layers = len(real_dims) - 1
    param_dtype = flat_params[0].dtype
    itemsize = jnp.dtype(param_dtype).itemsize

    # --- batch tiling: even split, grid >= 2, minimal tail padding ----------
    tile_b = _choose_tile_b(B, max_tile_b)
    grid_b = pl.cdiv(B, tile_b)
    b_pad = grid_b * tile_b
    xp = x if (b_pad == B) else jnp.pad(x, ((0, b_pad - B), (0, 0)))
    if xp.dtype != param_dtype:
        xp = xp.astype(param_dtype)

    # --- specs ---------------------------------------------------------------
    # x: real feature width (last block dim == full array dim -> legal).
    in_specs = [pl.BlockSpec((tile_b, in_dim), lambda i: (i, 0))]
    for l in range(num_layers):
        # constant block index -> params fetched once, VMEM-resident across tiles
        in_specs.append(pl.BlockSpec((pad_dims[l], pad_dims[l + 1]), lambda i: (0, 0)))
        in_specs.append(pl.BlockSpec((1, pad_dims[l + 1]), lambda i: (0, 0)))
    out_spec = pl.BlockSpec((tile_b, 1), lambda i: (i, 0))  # narrow output

    # --- cost estimate (real work / real bytes) so XLA schedules around us ---
    param_bytes = sum(int(p.size) * jnp.dtype(p.dtype).itemsize for p in flat_params)
    flops = 2 * B * sum(real_dims[i] * real_dims[i + 1] for i in range(num_layers))
    transcendentals = B * sum(real_dims[1:-1])
    bytes_accessed = (B * in_dim * itemsize) + param_bytes + (B * jnp.dtype(x.dtype).itemsize)
    cost = pl.CostEstimate(flops=flops, transcendentals=transcendentals,
                           bytes_accessed=bytes_accessed)

    kernel = functools.partial(_mlp_kernel, num_layers=num_layers)

    out = pl.pallas_call(
        kernel,
        out_shape=jax.ShapeDtypeStruct((b_pad, 1), x.dtype),
        grid=(grid_b,),
        in_specs=in_specs,
        out_specs=out_spec,
        compiler_params=pltpu.CompilerParams(
            dimension_semantics=("parallel",),  # shard batch tiles across v7x TCs
            vmem_limit_bytes=_vmem_limit_bytes(tile_b, in_dim, pad_dims,
                                               param_bytes, itemsize),
        ),
        cost_estimate=cost,
    )(xp, *flat_params)

    return out if b_pad == B else out[:B]  # (B, 1); drop batch-tail padding only


# --------------------------------- demo ------------------------------------ #

if __name__ == "__main__":
    batch = 8
    input_dim = 32
    hidden_dims = [64, 64]

    key = jax.random.PRNGKey(0)
    k_x, k_p = jax.random.split(key)

    x = jax.random.normal(k_x, (batch, input_dim), dtype=jnp.float32)
    params = init_value_network_params(k_p, input_dim, hidden_dims)
    prepared = prepare_value_network_params(params)  # pad once, outside forward path

    value = value_network_forward(prepared, x)
    value = jax.block_until_ready(value)

    # sanity check against plain-JAX reference of the same math
    ref = x
    for i, (w, b) in enumerate(params):
        ref = ref @ w + b
        if i != len(params) - 1:
            ref = jnp.tanh(ref)

    assert value.shape == (batch, 1)
    assert jnp.allclose(value, ref, atol=1e-4, rtol=1e-4)

    print("KERNEL_OK")
</pallas_src>

<mosaic_0001>
module attributes {stable_mosaic.version = 11 : i64} {
  func.func @_mlp_kernel(%arg0: i32, %arg1: memref<8x32xf32, #tpu.memory_space<vmem>>, %arg2: memref<32x128xf32, #tpu.memory_space<vmem>>, %arg3: memref<1x128xf32, #tpu.memory_space<vmem>>, %arg4: memref<128x128xf32, #tpu.memory_space<vmem>>, %arg5: memref<1x128xf32, #tpu.memory_space<vmem>>, %arg6: memref<128x128xf32, #tpu.memory_space<vmem>>, %arg7: memref<1x128xf32, #tpu.memory_space<vmem>>, %arg8: memref<8x1xf32, #tpu.memory_space<vmem>>) attributes {dimension_semantics = [#tpu.dimension_semantics<parallel>], iteration_bounds = array<i64: 1>, scalar_prefetch = 0 : i64, scratch_operands = 0 : i64, tpu.core_type = #tpu.core_type<tc>, window_params = [{transform_indices = @transform_0, window_bounds = array<i64: 8, 32>}, {pipeline_mode = #tpu.pipeline_mode<synchronous>, transform_indices = @transform_1, window_bounds = array<i64: 32, 128>}, {pipeline_mode = #tpu.pipeline_mode<synchronous>, transform_indices = @transform_2, window_bounds = array<i64: 1, 128>}, {pipeline_mode = #tpu.pipeline_mode<synchronous>, transform_indices = @transform_3, window_bounds = array<i64: 128, 128>}, {pipeline_mode = #tpu.pipeline_mode<synchronous>, transform_indices = @transform_4, window_bounds = array<i64: 1, 128>}, {pipeline_mode = #tpu.pipeline_mode<synchronous>, transform_indices = @transform_5, window_bounds = array<i64: 128, 128>}, {pipeline_mode = #tpu.pipeline_mode<synchronous>, transform_indices = @transform_6, window_bounds = array<i64: 1, 128>}, {transform_indices = @transform_7, window_bounds = array<i64: 8, 1>}]} {
    %c0 = arith.constant 0 : index
    %c0_0 = arith.constant 0 : index
    %0 = vector.load %arg1[%c0, %c0_0] : memref<8x32xf32, #tpu.memory_space<vmem>>, vector<8x32xf32>
    %c0_1 = arith.constant 0 : index
    %c0_2 = arith.constant 0 : index
    %1 = vector.load %arg2[%c0_1, %c0_2] : memref<32x128xf32, #tpu.memory_space<vmem>>, vector<32x128xf32>
    %c0_3 = arith.constant 0 : index
    %c0_4 = arith.constant 0 : index
    %2 = vector.load %arg3[%c0_3, %c0_4] : memref<1x128xf32, #tpu.memory_space<vmem>>, vector<1x128xf32>
    %cst = arith.constant dense<0.000000e+00> : vector<8x128xf32>
    %3 = tpu.matmul %0, %1, %cst {dimension_numbers = #tpu.dot_dimension_numbers<[1], [0], [0], [1], [0, 0, 1, 1], [], []>} : vector<8x32xf32>, vector<32x128xf32>, vector<8x128xf32> -> vector<8x128xf32>
    %4 = vector.broadcast %2 : vector<1x128xf32> to vector<8x128xf32>
    %5 = arith.addf %3, %4 : vector<8x128xf32>
    %6 = math.tanh %5 : vector<8x128xf32>
    %c0_5 = arith.constant 0 : index
    %c0_6 = arith.constant 0 : index
    %7 = vector.load %arg4[%c0_5, %c0_6] : memref<128x128xf32, #tpu.memory_space<vmem>>, vector<128x128xf32>
    %c0_7 = arith.constant 0 : index
    %c0_8 = arith.constant 0 : index
    %8 = vector.load %arg5[%c0_7, %c0_8] : memref<1x128xf32, #tpu.memory_space<vmem>>, vector<1x128xf32>
    %cst_9 = arith.constant dense<0.000000e+00> : vector<8x128xf32>
    %9 = tpu.matmul %6, %7, %cst_9 {dimension_numbers = #tpu.dot_dimension_numbers<[1], [0], [0], [1], [0, 0, 1, 1], [], []>} : vector<8x128xf32>, vector<128x128xf32>, vector<8x128xf32> -> vector<8x128xf32>
    %10 = vector.broadcast %8 : vector<1x128xf32> to vector<8x128xf32>
    %11 = arith.addf %9, %10 : vector<8x128xf32>
    %12 = math.tanh %11 : vector<8x128xf32>
    %c0_10 = arith.constant 0 : index
    %c0_11 = arith.constant 0 : index
    %13 = vector.load %arg6[%c0_10, %c0_11] : memref<128x128xf32, #tpu.memory_space<vmem>>, vector<128x128xf32>
    %c0_12 = arith.constant 0 : index
    %c0_13 = arith.constant 0 : index
    %14 = vector.load %arg7[%c0_12, %c0_13] : memref<1x128xf32, #tpu.memory_space<vmem>>, vector<1x128xf32>
    %cst_14 = arith.constant dense<0.000000e+00> : vector<8x128xf32>
    %15 = tpu.matmul %12, %13, %cst_14 {dimension_numbers = #tpu.dot_dimension_numbers<[1], [0], [0], [1], [0, 0, 1, 1], [], []>} : vector<8x128xf32>, vector<128x128xf32>, vector<8x128xf32> -> vector<8x128xf32>
    %16 = vector.broadcast %14 : vector<1x128xf32> to vector<8x128xf32>
    %17 = arith.addf %15, %16 : vector<8x128xf32>
    %18 = vector.extract_strided_slice %17 {offsets = [0, 0], sizes = [8, 1], strides = [1, 1]} : vector<8x128xf32> to vector<8x1xf32>
    %c0_15 = arith.constant 0 : index
    %c0_16 = arith.constant 0 : index
    %19 = vector.load %arg8[%c0_15, %c0_16] : memref<8x1xf32, #tpu.memory_space<vmem>>, vector<8x1xf32>
    tpu.vector_store %arg8[%c0_15, %c0_16], %18 {strides = array<i32>} : memref<8x1xf32, #tpu.memory_space<vmem>>, vector<8x1xf32>,
    return
  }
  func.func @transform_0(%arg0: i32) -> (i32, i32) {
    %c0_i32 = arith.constant 0 : i32
    %c0_i32_0 = arith.constant 0 : i32
    return %arg0, %c0_i32 : i32, i32
  }
  func.func @transform_1(%arg0: i32) -> (i32, i32) {
    %c0_i32 = arith.constant 0 : i32
    %c0_i32_0 = arith.constant 0 : i32
    %c0_i32_1 = arith.constant 0 : i32
    return %c0_i32, %c0_i32_0 : i32, i32
  }
  func.func @transform_2(%arg0: i32) -> (i32, i32) {
    %c0_i32 = arith.constant 0 : i32
    %c0_i32_0 = arith.constant 0 : i32
    %c0_i32_1 = arith.constant 0 : i32
    return %c0_i32, %c0_i32_0 : i32, i32
  }
  func.func @transform_3(%arg0: i32) -> (i32, i32) {
    %c0_i32 = arith.constant 0 : i32
    %c0_i32_0 = arith.constant 0 : i32
    %c0_i32_1 = arith.constant 0 : i32
    return %c0_i32, %c0_i32_0 : i32, i32
  }
  func.func @transform_4(%arg0: i32) -> (i32, i32) {
    %c0_i32 = arith.constant 0 : i32
    %c0_i32_0 = arith.constant 0 : i32
    %c0_i32_1 = arith.constant 0 : i32
    return %c0_i32, %c0_i32_0 : i32, i32
  }
  func.func @transform_5(%arg0: i32) -> (i32, i32) {
    %c0_i32 = arith.constant 0 : i32
    %c0_i32_0 = arith.constant 0 : i32
    %c0_i32_1 = arith.constant 0 : i32
    return %c0_i32, %c0_i32_0 : i32, i32
  }
  func.func @transform_6(%arg0: i32) -> (i32, i32) {
    %c0_i32 = arith.constant 0 : i32
    %c0_i32_0 = arith.constant 0 : i32
    %c0_i32_1 = arith.constant 0 : i32
    return %c0_i32, %c0_i32_0 : i32, i32
  }
  func.func @transform_7(%arg0: i32) -> (i32, i32) {
    %c0_i32 = arith.constant 0 : i32
    %c0_i32_0 = arith.constant 0 : i32
    return %arg0, %c0_i32 : i32, i32
  }
}

</mosaic_0001>

<llo_original>
// kernel: tpu_custom_call.1
$region0: #{tpu_custom_call.1}
  #allocation0 [shape = 'u32[]', space=smem, size = 0x4, offset = 0x4, fixed_abs, tag = 'smem constant byte address 0x4 - core index']
  #allocation1 [shape = 'u32[144,128]{1,0:T(1,128)}', space=vmem, size = 0x12000, scoped, tag = 'internal scratch']
  %s0 = inlined_call_operand.hbm [shape: f32[8,32], index: 0, kind: input, shape index: {}]
  %s1 = inlined_call_operand.hbm [shape: f32[32,128], index: 1, kind: input, shape index: {}]
  %s2 = inlined_call_operand.vmem [shape: f32[1,128], index: 2, kind: input, shape index: {}]
  %s3 = inlined_call_operand.hbm [shape: f32[128,128], index: 3, kind: input, shape index: {}]
  %s4 = inlined_call_operand.vmem [shape: f32[1,128], index: 4, kind: input, shape index: {}]
  %s5 = inlined_call_operand.hbm [shape: f32[128,128], index: 5, kind: input, shape index: {}]
  %s6 = inlined_call_operand.vmem [shape: f32[1,128], index: 6, kind: input, shape index: {}]
  %s7 = inlined_call_operand.vmem [shape: f32[8,1], index: 7, kind: output, shape index: {}]
  %s8 = sld [smem:[#allocation0]]
  $region54: #{tpu_custom_call.1} parent=0
    _
  %s10 = ssub.s32 1, %s8
  %s11 = scalar_select 0, %s10, %s8
  $region1: #{tpu_custom_call.1} parent=0
    #allocation2 [shape = 'u8[4096]{0}', space=vmem, size = 0x1000, scoped, tag = 'input window, operand 0, single buffered']
    #allocation3 [shape = 's32[1]{0}', space=sflag, size = 0x4, scoped, tag = 'scoped memory for tpu_custom_call.1']
    #allocation4 [shape = 'u8[16384]{0}', space=vmem, size = 0x4000, scoped, tag = 'input window, operand 1, single buffered']
    #allocation5 [shape = 's32[1]{0}', space=sflag, size = 0x4, scoped, tag = 'scoped memory for tpu_custom_call.1']
    #allocation6 [shape = 'u8[65536]{0}', space=vmem, size = 0x10000, scoped, tag = 'input window, operand 3, single buffered']
    #allocation7 [shape = 'u8[65536]{0}', space=vmem, size = 0x10000, scoped, tag = 'input window, operand 5, single buffered']
    #allocation8 [shape = 's32[1]{0}', space=sflag, size = 0x4, scoped, tag = 'scoped memory for tpu_custom_call.1']
    %12 = vsyncpa [#allocation3], 0
    %13 = vsyncpa [#allocation5], 0
    %14 = vsyncpa [#allocation8], 0
    // Predicated region
    $region2: #{tpu_custom_call.1} parent=1 // pred_check
      _
    $region3: #{tpu_custom_call.1} parent=1 // pred_check_branch
      %16 = sbr.rel (0) target = $region5
    $region4: #{tpu_custom_call.1} parent=1 // pred_region
      %s18 = ssub.s32 128, 128
      %19 = vsyncadd [#allocation3], %s18
      %s21 = sshll.u32 [#allocation2], 4
      %s22 = int_to_ptr.vmem [resolvable:$true] %s21
      %24 = dma.hbm_to_vmem [thread:$0]  %s0, 128, %s22, [#allocation3]
    $region5: #{tpu_custom_call.1} parent=1 // pred_fallthru
      _
    // Predicated region
    $region6: #{tpu_custom_call.1} parent=1 // pred_check
      _
    $region7: #{tpu_custom_call.1} parent=1 // pred_check_branch
      %26 = sbr.rel (0) target = $region9
    $region8: #{tpu_custom_call.1} parent=1 // pred_region
      %s28 = ssub.s32 512, 512
      %29 = vsyncadd [#allocation5], %s28
      %s30 = sshll.u32 [#allocation4], 4
      %s31 = int_to_ptr.vmem [resolvable:$true] %s30
      %36 = dma.hbm_to_vmem [thread:$0]  %s1, 512, %s31, [#allocation5], 128, 128, 8
    $region9: #{tpu_custom_call.1} parent=1 // pred_fallthru
      _
    // Predicated region
    $region10: #{tpu_custom_call.1} parent=1 // pred_check
      _
    $region11: #{tpu_custom_call.1} parent=1 // pred_check_branch
      %38 = sbr.rel (0) target = $region13
    $region12: #{tpu_custom_call.1} parent=1 // pred_region
      _
    $region13: #{tpu_custom_call.1} parent=1 // pred_fallthru
      _
    // Predicated region
    $region14: #{tpu_custom_call.1} parent=1 // pred_check
      _
    $region15: #{tpu_custom_call.1} parent=1 // pred_check_branch
      %40 = sbr.rel (0) target = $region17
    $region16: #{tpu_custom_call.1} parent=1 // pred_region
      %s42 = ssub.s32 2048, 2048
      %43 = vsyncadd [#allocation5], %s42
      %s44 = sshll.u32 [#allocation6], 4
      %s45 = int_to_ptr.vmem [resolvable:$true] %s44
      %50 = dma.hbm_to_vmem [thread:$0]  %s3, 2048, %s45, [#allocation5], 128, 128, 8
    $region17: #{tpu_custom_call.1} parent=1 // pred_fallthru
      _
    // Predicated region
    $region18: #{tpu_custom_call.1} parent=1 // pred_check
      _
    $region19: #{tpu_custom_call.1} parent=1 // pred_check_branch
      %52 = sbr.rel (0) target = $region21
    $region20: #{tpu_custom_call.1} parent=1 // pred_region
      _
    $region21: #{tpu_custom_call.1} parent=1 // pred_fallthru
      _
    // Predicated region
    $region22: #{tpu_custom_call.1} parent=1 // pred_check
      _
    $region23: #{tpu_custom_call.1} parent=1 // pred_check_branch
      %54 = sbr.rel (0) target = $region25
    $region24: #{tpu_custom_call.1} parent=1 // pred_region
      %s56 = ssub.s32 2048, 2048
      %57 = vsyncadd [#allocation8], %s56
      %s58 = sshll.u32 [#allocation7], 4
      %s59 = int_to_ptr.vmem [resolvable:$true] %s58
      %64 = dma.hbm_to_vmem [thread:$0]  %s5, 2048, %s59, [#allocation8], 128, 128, 8
    $region25: #{tpu_custom_call.1} parent=1 // pred_fallthru
      _
    // Predicated region
    $region26: #{tpu_custom_call.1} parent=1 // pred_check
      _
    $region27: #{tpu_custom_call.1} parent=1 // pred_check_branch
      %66 = sbr.rel (0) target = $region29
    $region28: #{tpu_custom_call.1} parent=1 // pred_region
      _
    $region29: #{tpu_custom_call.1} parent=1 // pred_fallthru
      _
    // Predicated region
    $region30: #{tpu_custom_call.1} parent=1 // pred_check
      _
    $region31: #{tpu_custom_call.1} parent=1 // pred_check_branch
      %68 = sbr.rel (0) target = $region33
    $region32: #{tpu_custom_call.1} parent=1 // pred_region
      %69 = dma.done [#allocation3], 128
    $region33: #{tpu_custom_call.1} parent=1 // pred_fallthru
      _
    // Predicated region
    $region34: #{tpu_custom_call.1} parent=1 // pred_check
      _
    $region35: #{tpu_custom_call.1} parent=1 // pred_check_branch
      %71 = sbr.rel (0) target = $region37
    $region36: #{tpu_custom_call.1} parent=1 // pred_region
      %72 = dma.done [#allocation5], 512
    $region37: #{tpu_custom_call.1} parent=1 // pred_fallthru
      _
    // Predicated region
    $region38: #{tpu_custom_call.1} parent=1 // pred_check
      _
    $region39: #{tpu_custom_call.1} parent=1 // pred_check_branch
      %74 = sbr.rel (0) target = $region41
    $region40: #{tpu_custom_call.1} parent=1 // pred_region
      %75 = dma.done [#allocation5], 2048
    $region41: #{tpu_custom_call.1} parent=1 // pred_fallthru
      _
    // Predicated region
    $region42: #{tpu_custom_call.1} parent=1 // pred_check
      _
    $region43: #{tpu_custom_call.1} parent=1 // pred_check_branch
      %77 = sbr.rel (0) target = $region45
    $region44: #{tpu_custom_call.1} parent=1 // pred_region
      %78 = dma.done [#allocation8], 2048
    $region45: #{tpu_custom_call.1} parent=1 // pred_fallthru
      _
    %v79 = vld [vmem:[#allocation2] sm:$0xff]
    %v80 = vld [vmem:[#allocation4] sm:$0xff]
    %v81 = vld [vmem:[#allocation4 + $0x8] sm:$0xff]
    %v82 = vld [vmem:[#allocation4 + $0x10] sm:$0xff]
    %v83 = vld [vmem:[#allocation4 + $0x18] sm:$0xff]
    %v84 = vld [vmem:[%s2] sm:$0x1]
    %v86 = vlaneseq
    %v87 = vshrl.u32 %v86, 7
    %v88 = vsub.s32 0, %v87
    %v89 = vrot.slane %v84, %v88
    %vm91 = vcmask 261120
    %v93 = vsel %vm91, %v79, 0
    %95 = vmatprep.subr.mxu0 0.0
    %96 = vmatpush1.msra.mxu0 %v80
    %97 = vmatprep.subr.mxu0 0.0
    %98 = vmatpush1.msra.mxu0 %v81
    %99 = vmatprep.subr.mxu0 0.0
    %100 = vmatpush1.msra.mxu0 %v82
    %101 = vmatprep.subr.mxu0 0.0
    %102 = vmatpush1.msra.mxu0 %v83
    %103 = vmatprep.subr.mxu0 0.0
    %104 = vmatpush1.msra.mxu0 0.0
    %105 = vmatprep.subr.mxu0 0.0
    %106 = vmatpush1.msra.mxu0 0.0
    %107 = vmatprep.subr.mxu0 0.0
    %108 = vmatpush1.msra.mxu0 0.0
    %109 = vmatprep.subr.mxu0 0.0
    %110 = vmatpush1.msra.mxu0 0.0
    %111 = vmatprep.subr.mxu0 0.0
    %112 = vmatpush1.msra.mxu0 0.0
    %113 = vmatprep.subr.mxu0 0.0
    %114 = vmatpush1.msra.mxu0 0.0
    %115 = vmatprep.subr.mxu0 0.0
    %116 = vmatpush1.msra.mxu0 0.0
    %117 = vmatprep.subr.mxu0 0.0
    %118 = vmatpush1.msra.mxu0 0.0
    %119 = vmatprep.subr.mxu0 0.0
    %120 = vmatpush1.msra.mxu0 0.0
    %121 = vmatprep.subr.mxu0 0.0
    %122 = vmatpush1.msra.mxu0 0.0
    %123 = vmatprep.subr.mxu0 0.0
    %124 = vmatpush1.msra.mxu0 0.0
    %125 = vmatprep.subr.mxu0 0.0
    %126 = vmatpush1.msra.mxu0 0.0
    %127 = vmatprep.subr.mxu0 0.0
    %128 = vmatpush1.msra.mxu0 0.0
    %129 = vmatprep.subr.mxu0 0.0
    %130 = vmatpush1.msra.mxu0 0.0
    %131 = vmatprep.subr.mxu0 0.0
    %132 = vmatpush1.msra.mxu0 0.0
    %133 = vmatprep.subr.mxu0 0.0
    %134 = vmatpush1.msra.mxu0 0.0
    %135 = vmatprep.subr.mxu0 0.0
    %136 = vmatpush1.msra.mxu0 0.0
    %137 = vmatprep.subr.mxu0 0.0
    %138 = vmatpush1.msra.mxu0 0.0
    %139 = vmatprep.subr.mxu0 0.0
    %140 = vmatpush1.msra.mxu0 0.0
    %141 = vmatprep.subr.mxu0 0.0
    %142 = vmatpush1.msra.mxu0 0.0
    %143 = vmatprep.subr.mxu0 0.0
    %144 = vmatpush1.msra.mxu0 0.0
    %145 = vmatprep.subr.mxu0 0.0
    %146 = vmatpush1.msra.mxu0 0.0
    %147 = vmatprep.subr.mxu0 0.0
    %148 = vmatpush1.msra.mxu0 0.0
    %149 = vmatprep.subr.mxu0 0.0
    %150 = vmatpush1.msra.mxu0 0.0
    %151 = vmatprep.subr.mxu0 0.0
    %152 = vmatpush1.msra.mxu0 0.0
    %153 = vmatprep.subr.mxu0 0.0
    %154 = vmatpush1.msra.mxu0 0.0
    %155 = vmatprep.subr.mxu0 0.0
    %156 = vmatpush1.msra.mxu0 0.0
    %157 = vmatprep.subr.mxu0 0.0
    %158 = vmatpush1.msra.mxu0 0.0
    %159 = vmatprep.mubr.f32.mxu0 0.0
    %160 = vmatmul.mubr.f32.gmra.mrb[0].mxu0 %v93
    %v161 = vpop.f32.mrb[0].mxu0
    %v162 = vadd.f32 %v89, %v161
    %v163 = vpop.f32.mrb[0].mxu0
    %164 = vdwg.mxu0
    %v165 = vtanh.pop %v162
    %v166 = vld [vmem:[#allocation6] sm:$0xff]
    %v167 = vld [vmem:[#allocation6 + $0x8] sm:$0xff]
    %v168 = vld [vmem:[#allocation6 + $0x10] sm:$0xff]
    %v169 = vld [vmem:[#allocation6 + $0x18] sm:$0xff]
    %v170 = vld [vmem:[#allocation6 + $0x20] sm:$0xff]
    %v171 = vld [vmem:[#allocation6 + $0x28] sm:$0xff]
    %v172 = vld [vmem:[#allocation6 + $0x30] sm:$0xff]
    %v173 = vld [vmem:[#allocation6 + $0x38] sm:$0xff]
    %v174 = vld [vmem:[#allocation6 + $0x40] sm:$0xff]
    %v175 = vld [vmem:[#allocation6 + $0x48] sm:$0xff]
    %v176 = vld [vmem:[#allocation6 + $0x50] sm:$0xff]
    %v177 = vld [vmem:[#allocation6 + $0x58] sm:$0xff]
    %v178 = vld [vmem:[#allocation6 + $0x60] sm:$0xff]
    %v179 = vld [vmem:[#allocation6 + $0x68] sm:$0xff]
    %v180 = vld [vmem:[#allocation6 + $0x70] sm:$0xff]
    %v181 = vld [vmem:[#allocation6 + $0x78] sm:$0xff]
    %v182 = vld [vmem:[%s4] sm:$0x1]
    %v184 = vlaneseq
    %v185 = vshrl.u32 %v184, 7
    %v186 = vsub.s32 0, %v185
    %v187 = vrot.slane %v182, %v186
    %189 = vmatprep.subr.mxu0 0.0
    %190 = vmatpush1.msra.mxu0 %v166
    %191 = vmatprep.subr.mxu0 0.0
    %192 = vmatpush1.msra.mxu0 %v167
    %193 = vmatprep.subr.mxu0 0.0
    %194 = vmatpush1.msra.mxu0 %v168
    %195 = vmatprep.subr.mxu0 0.0
    %196 = vmatpush1.msra.mxu0 %v169
    %197 = vmatprep.subr.mxu0 0.0
    %198 = vmatpush1.msra.mxu0 %v170
    %199 = vmatprep.subr.mxu0 0.0
    %200 = vmatpush1.msra.mxu0 %v171
    %201 = vmatprep.subr.mxu0 0.0
    %202 = vmatpush1.msra.mxu0 %v172
    %203 = vmatprep.subr.mxu0 0.0
    %204 = vmatpush1.msra.mxu0 %v173
    %205 = vmatprep.subr.mxu0 0.0
    %206 = vmatpush1.msra.mxu0 %v174
    %207 = vmatprep.subr.mxu0 0.0
    %208 = vmatpush1.msra.mxu0 %v175
    %209 = vmatprep.subr.mxu0 0.0
    %210 = vmatpush1.msra.mxu0 %v176
    %211 = vmatprep.subr.mxu0 0.0
    %212 = vmatpush1.msra.mxu0 %v177
    %213 = vmatprep.subr.mxu0 0.0
    %214 = vmatpush1.msra.mxu0 %v178
    %215 = vmatprep.subr.mxu0 0.0
    %216 = vmatpush1.msra.mxu0 %v179
    %217 = vmatprep.subr.mxu0 0.0
    %218 = vmatpush1.msra.mxu0 %v180
    %219 = vmatprep.subr.mxu0 0.0
    %220 = vmatpush1.msra.mxu0 %v181
    %221 = vmatprep.subr.mxu0 0.0
    %222 = vmatpush1.msra.mxu0 0.0
    %223 = vmatprep.subr.mxu0 0.0
    %224 = vmatpush1.msra.mxu0 0.0
    %225 = vmatprep.subr.mxu0 0.0
    %226 = vmatpush1.msra.mxu0 0.0
    %227 = vmatprep.subr.mxu0 0.0
    %228 = vmatpush1.msra.mxu0 0.0
    %229 = vmatprep.subr.mxu0 0.0
    %230 = vmatpush1.msra.mxu0 0.0
    %231 = vmatprep.subr.mxu0 0.0
    %232 = vmatpush1.msra.mxu0 0.0
    %233 = vmatprep.subr.mxu0 0.0
    %234 = vmatpush1.msra.mxu0 0.0
    %235 = vmatprep.subr.mxu0 0.0
    %236 = vmatpush1.msra.mxu0 0.0
    %237 = vmatprep.subr.mxu0 0.0
    %238 = vmatpush1.msra.mxu0 0.0
    %239 = vmatprep.subr.mxu0 0.0
    %240 = vmatpush1.msra.mxu0 0.0
    %241 = vmatprep.subr.mxu0 0.0
    %242 = vmatpush1.msra.mxu0 0.0
    %243 = vmatprep.subr.mxu0 0.0
    %244 = vmatpush1.msra.mxu0 0.0
    %245 = vmatprep.subr.mxu0 0.0
    %246 = vmatpush1.msra.mxu0 0.0
    %247 = vmatprep.subr.mxu0 0.0
    %248 = vmatpush1.msra.mxu0 0.0
    %249 = vmatprep.subr.mxu0 0.0
    %250 = vmatpush1.msra.mxu0 0.0
    %251 = vmatprep.subr.mxu0 0.0
    %252 = vmatpush1.msra.mxu0 0.0
    %253 = vmatprep.mubr.f32.mxu0 0.0
    %254 = vmatmul.mubr.f32.gmra.mrb[0].mxu0 %v165
    %v255 = vpop.f32.mrb[0].mxu0
    %v256 = vadd.f32 %v187, %v255
    %v257 = vpop.f32.mrb[0].mxu0
    %258 = vdwg.mxu0
    %v259 = vtanh.pop %v256
    %v260 = vld [vmem:[#allocation7] sm:$0xff]
    %v261 = vld [vmem:[#allocation7 + $0x8] sm:$0xff]
    %v262 = vld [vmem:[#allocation7 + $0x10] sm:$0xff]
    %v263 = vld [vmem:[#allocation7 + $0x18] sm:$0xff]
    %v264 = vld [vmem:[#allocation7 + $0x20] sm:$0xff]
    %v265 = vld [vmem:[#allocation7 + $0x28] sm:$0xff]
    %v266 = vld [vmem:[#allocation7 + $0x30] sm:$0xff]
    %v267 = vld [vmem:[#allocation7 + $0x38] sm:$0xff]
    %v268 = vld [vmem:[#allocation7 + $0x40] sm:$0xff]
    %v269 = vld [vmem:[#allocation7 + $0x48] sm:$0xff]
    %v270 = vld [vmem:[#allocation7 + $0x50] sm:$0xff]
    %v271 = vld [vmem:[#allocation7 + $0x58] sm:$0xff]
    %v272 = vld [vmem:[#allocation7 + $0x60] sm:$0xff]
    %v273 = vld [vmem:[#allocation7 + $0x68] sm:$0xff]
    %v274 = vld [vmem:[#allocation7 + $0x70] sm:$0xff]
    %v275 = vld [vmem:[#allocation7 + $0x78] sm:$0xff]
    %v276 = vld [vmem:[%s6] sm:$0x1]
    %v278 = vlaneseq
    %v279 = vshrl.u32 %v278, 7
    %v280 = vsub.s32 0, %v279
    %v281 = vrot.slane %v276, %v280
    %283 = vmatprep.subr.mxu0 0.0
    %284 = vmatpush1.msra.mxu0 %v260
    %285 = vmatprep.subr.mxu0 0.0
    %286 = vmatpush1.msra.mxu0 %v261
    %287 = vmatprep.subr.mxu0 0.0
    %288 = vmatpush1.msra.mxu0 %v262
    %289 = vmatprep.subr.mxu0 0.0
    %290 = vmatpush1.msra.mxu0 %v263
    %291 = vmatprep.subr.mxu0 0.0
    %292 = vmatpush1.msra.mxu0 %v264
    %293 = vmatprep.subr.mxu0 0.0
    %294 = vmatpush1.msra.mxu0 %v265
    %295 = vmatprep.subr.mxu0 0.0
    %296 = vmatpush1.msra.mxu0 %v266
    %297 = vmatprep.subr.mxu0 0.0
    %298 = vmatpush1.msra.mxu0 %v267
    %299 = vmatprep.subr.mxu0 0.0
    %300 = vmatpush1.msra.mxu0 %v268
    %301 = vmatprep.subr.mxu0 0.0
    %302 = vmatpush1.msra.mxu0 %v269
    %303 = vmatprep.subr.mxu0 0.0
    %304 = vmatpush1.msra.mxu0 %v270
    %305 = vmatprep.subr.mxu0 0.0
    %306 = vmatpush1.msra.mxu0 %v271
    %307 = vmatprep.subr.mxu0 0.0
    %308 = vmatpush1.msra.mxu0 %v272
    %309 = vmatprep.subr.mxu0 0.0
    %310 = vmatpush1.msra.mxu0 %v273
    %311 = vmatprep.subr.mxu0 0.0
    %312 = vmatpush1.msra.mxu0 %v274
    %313 = vmatprep.subr.mxu0 0.0
    %314 = vmatpush1.msra.mxu0 %v275
    %315 = vmatprep.subr.mxu0 0.0
    %316 = vmatpush1.msra.mxu0 0.0
    %317 = vmatprep.subr.mxu0 0.0
    %318 = vmatpush1.msra.mxu0 0.0
    %319 = vmatprep.subr.mxu0 0.0
    %320 = vmatpush1.msra.mxu0 0.0
    %321 = vmatprep.subr.mxu0 0.0
    %322 = vmatpush1.msra.mxu0 0.0
    %323 = vmatprep.subr.mxu0 0.0
    %324 = vmatpush1.msra.mxu0 0.0
    %325 = vmatprep.subr.mxu0 0.0
    %326 = vmatpush1.msra.mxu0 0.0
    %327 = vmatprep.subr.mxu0 0.0
    %328 = vmatpush1.msra.mxu0 0.0
    %329 = vmatprep.subr.mxu0 0.0
    %330 = vmatpush1.msra.mxu0 0.0
    %331 = vmatprep.subr.mxu0 0.0
    %332 = vmatpush1.msra.mxu0 0.0
    %333 = vmatprep.subr.mxu0 0.0
    %334 = vmatpush1.msra.mxu0 0.0
    %335 = vmatprep.subr.mxu0 0.0
    %336 = vmatpush1.msra.mxu0 0.0
    %337 = vmatprep.subr.mxu0 0.0
    %338 = vmatpush1.msra.mxu0 0.0
    %339 = vmatprep.subr.mxu0 0.0
    %340 = vmatpush1.msra.mxu0 0.0
    %341 = vmatprep.subr.mxu0 0.0
    %342 = vmatpush1.msra.mxu0 0.0
    %343 = vmatprep.subr.mxu0 0.0
    %344 = vmatpush1.msra.mxu0 0.0
    %345 = vmatprep.subr.mxu0 0.0
    %346 = vmatpush1.msra.mxu0 0.0
    %347 = vmatprep.mubr.f32.mxu0 0.0
    %348 = vmatmul.mubr.f32.gmra.mrb[0].mxu0 %v259
    %v349 = vpop.f32.mrb[0].mxu0
    %v350 = vadd.f32 %v281, %v349
    %v351 = vpop.f32.mrb[0].mxu0
    %352 = vdwg.mxu0
    %vm353 = vcmask 7168
    %354 = vst.msk [vmem:[%s7] sm:$0xff] %vm353, %v350
    // Predicated region
    $region46: #{tpu_custom_call.1} parent=1 // pred_check
      _
    $region47: #{tpu_custom_call.1} parent=1 // pred_check_branch
      %356 = sbr.rel (0) target = $region49
    $region48: #{tpu_custom_call.1} parent=1 // pred_region
      _
    $region49: #{tpu_custom_call.1} parent=1 // pred_fallthru
      _
    // Predicated region
    $region50: #{tpu_custom_call.1} parent=1 // pred_check
      _
    $region51: #{tpu_custom_call.1} parent=1 // pred_check_branch
      %358 = sbr.rel (0) target = $region53
    $region52: #{tpu_custom_call.1} parent=1 // pred_region
      _
    $region53: #{tpu_custom_call.1} parent=1 // pred_fallthru
      _
    %359 = vsyncpa [#allocation3], 1
    %360 = vsyncpa [#allocation5], 1
    %361 = vsyncpa [#allocation8], 1

</llo_original>
